<compile_context>
chip_gen: v6e
topology: v6e:2x2x1
jax: 0.10.0
libtpu: 0.0.40
codegen_flags: <defaults>
</compile_context>

<pallas_src>
import functools
import numpy as np
import jax
import jax.numpy as jnp
from jax.experimental import pallas as pl
from jax.experimental.pallas import tpu as pltpu


# ----------------------------------------------------------------------------
# small utilities
# ----------------------------------------------------------------------------
def _gelu(x):
    # TODO(synk): PyTorch nn.GELU uses exact erf; tanh approximation used in-kernel.
    return 0.5 * x * (1.0 + jnp.tanh(0.7978845608028654 * (x + 0.044715 * x * x * x)))


def _apply_act(x, act):
    if act == "none":
        return x
    if act == "relu":
        return jnp.maximum(x, 0.0)
    if act == "gelu":
        return _gelu(x)
    raise ValueError(act)


def _default_vmem_limit():
    # Per-generation scoped-VMEM budget (v7x has only 64 MiB physical).
    try:
        info = pltpu.get_tpu_info()
        cap = int(info.vmem_capacity_bytes)
        return int(min(64 * 1024 * 1024, max(cap // 2, 16 * 1024 * 1024)))
    except Exception:
        return 32 * 1024 * 1024


_VMEM_LIMIT = _default_vmem_limit()


def _pick_tile(dim, target, align):
    """Largest tile <= target that exactly divides `dim` and is `align`-aligned;
    falls back to the full dim (always legal for the last-two-dims rule)."""
    if dim <= target:
        return dim
    t = (target // align) * align
    while t >= align:
        if dim % t == 0:
            return t
        t -= align
    return dim


# ----------------------------------------------------------------------------
# Pallas kernels
# ----------------------------------------------------------------------------
def _mm_kernel(*args, act, has_bias, has_res, has_ln):
    """Tiled GEMM, f32 VMEM accumulator, optional fused LayerNorm prologue on
    the A block and fused bias + activation + residual epilogue, bf16 store."""
    idx = 0
    a_ref = args[idx]; idx += 1
    b_ref = args[idx]; idx += 1
    if has_ln:
        g_ref = args[idx]; idx += 1
        bt_ref = args[idx]; idx += 1
    if has_bias:
        bias_ref = args[idx]; idx += 1
    if has_res:
        res_ref = args[idx]; idx += 1
    o_ref = args[idx]; idx += 1
    acc_ref = args[idx]

    k = pl.program_id(2)

    @pl.when(k == 0)
    def _():
        acc_ref[...] = jnp.zeros_like(acc_ref)

    a = a_ref[...]
    if has_ln:
        # Full-K block guaranteed by the wrapper; LayerNorm over the feature axis.
        af = a.astype(jnp.float32)
        mean = jnp.mean(af, axis=1, keepdims=True)
        d = af - mean
        var = jnp.mean(d * d, axis=1, keepdims=True)
        a = ((d * jax.lax.rsqrt(var + 1e-5)) * g_ref[...] + bt_ref[...]).astype(jnp.bfloat16)

    acc_ref[...] += jnp.dot(a, b_ref[...], preferred_element_type=jnp.float32)

    @pl.when(k == pl.num_programs(2) - 1)
    def _():
        r = acc_ref[...]
        if has_bias:
            r = r + bias_ref[...]
        r = _apply_act(r, act)
        if has_res:
            r = r + res_ref[...].astype(jnp.float32)
        o_ref[...] = r.astype(o_ref.dtype)


def pallas_matmul(a, b, bias=None, act="none", residual=None, ln=None,
                  out_dtype=jnp.bfloat16):
    """act(LN?(a) @ b + bias) + residual;  a:(M,K) b:(K,N).  bf16 MXU inputs,
    f32 accumulation, bf16 (default) HBM writeback, no wrapper padding."""
    M, K = a.shape
    K2, N = b.shape
    assert K == K2
    has_bias = bias is not None
    has_res = residual is not None
    has_ln = ln is not None

    tm = _pick_tile(M, 256, 8)
    tn = _pick_tile(N, 512, 128)
    tk = K if has_ln else _pick_tile(K, 512, 128)

    a = a.astype(jnp.bfloat16)
    b = b.astype(jnp.bfloat16)

    grid = (M // tm, N // tn, K // tk)

    in_specs = [pl.BlockSpec((tm, tk), lambda i, j, k: (i, k)),
                pl.BlockSpec((tk, tn), lambda i, j, k: (k, j))]
    operands = [a, b]
    if has_ln:
        in_specs += [pl.BlockSpec((1, tk), lambda i, j, k: (0, k)),
                     pl.BlockSpec((1, tk), lambda i, j, k: (0, k))]
        operands += [ln["g"].astype(jnp.float32).reshape(1, K),
                     ln["b"].astype(jnp.float32).reshape(1, K)]
    if has_bias:
        in_specs.append(pl.BlockSpec((1, tn), lambda i, j, k: (0, j)))
        operands.append(bias.astype(jnp.float32).reshape(1, N))
    if has_res:
        in_specs.append(pl.BlockSpec((tm, tn), lambda i, j, k: (i, j)))
        operands.append(residual.astype(jnp.bfloat16))

    out = pl.pallas_call(
        functools.partial(_mm_kernel, act=act, has_bias=has_bias,
                          has_res=has_res, has_ln=has_ln),
        out_shape=jax.ShapeDtypeStruct((M, N), out_dtype),
        grid=grid,
        in_specs=in_specs,
        out_specs=pl.BlockSpec((tm, tn), lambda i, j, k: (i, j)),
        scratch_shapes=[pltpu.VMEM((tm, tn), jnp.float32)],
        compiler_params=pltpu.CompilerParams(
            dimension_semantics=("parallel", "parallel", "arbitrary"),
            vmem_limit_bytes=_VMEM_LIMIT),
    )(*operands)
    return out


def _attn_kernel(qkv_ref, o_ref, *, nh, hd, scale):
    """All heads of one batch element; reads (N, 3C) qkv directly and writes
    (N, C) — no layout transposes outside the kernel."""
    # TODO(synk): for large N (>~1k tokens) switch to a KV-tiled online-softmax
    # (flash) variant; single-block scores are fine at these token counts.
    C = nh * hd
    qkv = qkv_ref[0]                                   # (N, 3C) bf16
    outs = []
    for h in range(nh):
        q = qkv[:, h * hd:(h + 1) * hd]
        k = qkv[:, C + h * hd: C + (h + 1) * hd]
        v = qkv[:, 2 * C + h * hd: 2 * C + (h + 1) * hd]
        s = jax.lax.dot_general(q, k, (((1,), (1,)), ((), ())),
                                preferred_element_type=jnp.float32) * scale
        m = jnp.max(s, axis=-1, keepdims=True)
        p = jnp.exp(s - m)
        denom = jnp.sum(p, axis=-1, keepdims=True)
        p = p * pl.reciprocal(denom, approx=True)
        outs.append(jnp.dot(p.astype(jnp.bfloat16), v,
                            preferred_element_type=jnp.float32))
    o_ref[0] = jnp.concatenate(outs, axis=-1).astype(o_ref.dtype)


def fused_attention_qkv(qkv, nh, scale):
    """qkv: (B, N, 3C) bf16 -> (B, N, C) bf16, one grid step per batch element."""
    B, N, C3 = qkv.shape
    C = C3 // 3
    hd = C // nh
    return pl.pallas_call(
        functools.partial(_attn_kernel, nh=nh, hd=hd, scale=scale),
        out_shape=jax.ShapeDtypeStruct((B, N, C), jnp.bfloat16),
        grid=(B,),
        in_specs=[pl.BlockSpec((1, N, C3), lambda b: (b, 0, 0))],
        out_specs=pl.BlockSpec((1, N, C), lambda b: (b, 0, 0)),
        compiler_params=pltpu.CompilerParams(
            dimension_semantics=("parallel",),
            vmem_limit_bytes=_VMEM_LIMIT),
    )(qkv.astype(jnp.bfloat16))


def _dw_kernel(x_ref, w_ref, b_ref, o_ref, *, H, W, act):
    """3x3 depthwise conv: 9 taps generated in VMEM, BN folded into w/b,
    activation + residual-add (center tap window) fused into the epilogue."""
    x = x_ref[0].astype(jnp.float32)                   # (H+2, W+2, C)
    C = x.shape[-1]
    acc = jnp.zeros((H, W, C), jnp.float32)
    idx = 0
    for di in range(3):
        for dj in range(3):
            acc = acc + x[di:di + H, dj:dj + W, :] * w_ref[idx]
            idx += 1
    y = _apply_act(acc + b_ref[...], act)
    o_ref[0] = (y + x[1:1 + H, 1:1 + W, :]).astype(o_ref.dtype)


def depthwise3x3_bn_act_res(x, w, bn, act, eps=1e-5):
    """x: (B, H, W, C) NHWC bf16; w: (C, 1, 3, 3) torch depthwise layout.
    Returns x + act(BN(dwconv(x))) in bf16."""
    # TODO(synk): row-tile the grid (B, H/th) with halo for large H (v7x VMEM).
    B, H, W, C = x.shape
    scale = bn["gamma"] * jax.lax.rsqrt(bn["var"] + eps)
    shift = bn["beta"] - bn["mean"] * scale
    wt = (w.reshape(C, 9).T * scale[None, :]).reshape(9, 1, C).astype(jnp.float32)
    b = shift.reshape(1, C).astype(jnp.float32)
    xp = jnp.pad(x.astype(jnp.bfloat16), ((0, 0), (1, 1), (1, 1), (0, 0)))

    return pl.pallas_call(
        functools.partial(_dw_kernel, H=H, W=W, act=act),
        out_shape=jax.ShapeDtypeStruct((B, H, W, C), jnp.bfloat16),
        grid=(B,),
        in_specs=[
            pl.BlockSpec((1, H + 2, W + 2, C), lambda bb: (bb, 0, 0, 0)),
            pl.BlockSpec((9, 1, C), lambda bb: (0, 0, 0)),
            pl.BlockSpec((1, C), lambda bb: (0, 0)),
        ],
        out_specs=pl.BlockSpec((1, H, W, C), lambda bb: (bb, 0, 0, 0)),
        compiler_params=pltpu.CompilerParams(
            dimension_semantics=("parallel",),
            vmem_limit_bytes=_VMEM_LIMIT),
    )(xp, wt, b)


# ----------------------------------------------------------------------------
# higher-level ops (thin glue around the Pallas kernels)
# ----------------------------------------------------------------------------
def linear(x, p, act="none", ln=None, residual=None, out_dtype=jnp.bfloat16):
    """nn.Linear (weight pre-transposed to (in, out) at init), optional fused
    LayerNorm prologue and fused residual-add epilogue."""
    lead = x.shape[:-1]
    x2 = x.reshape(-1, x.shape[-1])
    res2 = residual.reshape(-1, residual.shape[-1]) if residual is not None else None
    y = pallas_matmul(x2, p["w"], bias=p["b"], act=act, residual=res2, ln=ln,
                      out_dtype=out_dtype)
    return y.reshape(*lead, p["w"].shape[1])


def _fold_bn(wmat, b, bn, eps=1e-5):
    """Fold inference BatchNorm into a (K, Cout) GEMM weight + bias."""
    scale = bn["gamma"] * jax.lax.rsqrt(bn["var"] + eps)
    shift = bn["beta"] - bn["mean"] * scale
    wmat = wmat * scale[None, :]
    b = shift if b is None else b * scale + shift
    return wmat, b


def conv2d_nhwc(x, w, b=None, stride=1, padding=0, act="none", bn=None):
    """Conv2d on NHWC via bf16 im2col + fused GEMM (BN folded, act fused)."""
    # TODO(synk): a direct strided-tap Pallas conv would avoid the 9x im2col blowup.
    B, H, W, Cin = x.shape
    Cout, Cin_w, kh, kw = w.shape
    wmat = jnp.transpose(w, (2, 3, 1, 0)).reshape(kh * kw * Cin_w, Cout)
    if bn is not None:
        wmat, b = _fold_bn(wmat, b, bn)
    x = x.astype(jnp.bfloat16)
    if kh == 1 and kw == 1 and stride == 1 and padding == 0:
        y = pallas_matmul(x.reshape(B * H * W, Cin), wmat, bias=b, act=act)
        return y.reshape(B, H, W, Cout)
    xp = jnp.pad(x, ((0, 0), (padding, padding), (padding, padding), (0, 0)))
    Ho = (H + 2 * padding - kh) // stride + 1
    Wo = (W + 2 * padding - kw) // stride + 1
    cols = []
    for i in range(kh):
        for j in range(kw):
            cols.append(xp[:, i:i + stride * Ho:stride, j:j + stride * Wo:stride, :])
    cols = jnp.stack(cols, axis=3)                     # (B, Ho, Wo, kh*kw, Cin) bf16
    a = cols.reshape(B * Ho * Wo, kh * kw * Cin)
    y = pallas_matmul(a, wmat, bias=b, act=act)
    return y.reshape(B, Ho, Wo, Cout)


def pointwise_conv_bn_act(x2, conv, bn, act):
    """1x1 conv on flattened tokens (M, Cin) with BN folded into the GEMM."""
    Cout, Cin = conv["w"].shape[:2]
    wmat = conv["w"].reshape(Cout, Cin).T
    b = conv["b"]
    if bn is not None:
        wmat, b = _fold_bn(wmat, b, bn)
    return pallas_matmul(x2, wmat, bias=b, act=act)


# ----------------------------------------------------------------------------
# parameter init (deterministic, matching the torch __init__ shapes)
# ----------------------------------------------------------------------------
class RNG:
    def __init__(self, seed):
        self.key = jax.random.PRNGKey(seed)

    def next(self):
        self.key, sub = jax.random.split(self.key)
        return sub


def trunc_normal(rng, shape, std=0.02):
    return jax.random.truncated_normal(rng.next(), -2.0, 2.0, shape, jnp.float32) * std


def init_linear(rng, in_f, out_f, bias=True):
    # weight stored pre-transposed (in, out) and pre-cast to bf16 (no per-call cast)
    return {"w": trunc_normal(rng, (in_f, out_f)).astype(jnp.bfloat16),
            "b": jnp.zeros((out_f,), jnp.float32) if bias else None}


def init_conv(rng, cin, cout, k, groups=1, bias=True):
    fan_out = cout * k * k
    w = jax.random.normal(rng.next(), (cout, cin // groups, k, k),
                          jnp.float32) * np.sqrt(2.0 / fan_out)
    return {"w": w, "b": jnp.zeros((cout,), jnp.float32) if bias else None}


def init_bn(c):
    return {"gamma": jnp.ones((c,)), "beta": jnp.zeros((c,)),
            "mean": jnp.zeros((c,)), "var": jnp.ones((c,))}


def init_ln(c):
    return {"g": jnp.ones((c,)), "b": jnp.zeros((c,))}


def init_attention(rng, dim, num_heads, qkv_bias=False):
    return {"qkv": init_linear(rng, dim, dim * 3, bias=qkv_bias),
            "proj": init_linear(rng, dim, dim, bias=True),
            "num_heads": num_heads}


def init_mlp(rng, dim, hidden):
    return {"fc1": init_linear(rng, dim, hidden), "fc2": init_linear(rng, hidden, dim)}


def init_asf_encoder(rng, dim, num_heads, mlp_ratio, qkv_bias=False,
                     split_ratio=0.5, conv_ratio=1.0):
    attn_dim = int(dim * split_ratio)
    conv_dim = dim - attn_dim
    conv_hidden = int(conv_dim * conv_ratio)
    return {
        "attn_dim": attn_dim,
        "norm1": init_ln(attn_dim),
        "attn": init_attention(rng, attn_dim, num_heads, qkv_bias),
        # TODO(synk): ConvBranch_HMCB reconstructed as 1x1->BN->GELU, 3x3 DW->BN->GELU (+residual), 1x1->BN.
        "conv_branch": {
            "pw1": init_conv(rng, conv_dim, conv_hidden, 1, bias=False),
            "bn1": init_bn(conv_hidden),
            "dw": init_conv(rng, conv_hidden, conv_hidden, 3, groups=conv_hidden, bias=False),
            "bn2": init_bn(conv_hidden),
            "pw2": init_conv(rng, conv_hidden, attn_dim, 1, bias=False),
            "bn3": init_bn(attn_dim),
        },
        # TODO(synk): Fusion_adaptive reconstructed: token-mean squeeze -> 2-layer MLP -> softmax branch weights.
        "fuse": {"fc1": init_linear(rng, attn_dim, max(attn_dim // 4, 1)),
                 "fc2": init_linear(rng, max(attn_dim // 4, 1), 2)},
        "fc2": init_linear(rng, attn_dim, dim),
        "norm2": init_ln(dim),
        "mlp": init_mlp(rng, dim, int(dim * mlp_ratio)),
    }


def init_block(rng, dim, num_heads, mlp_ratio, qkv_bias=False):
    return {"norm1": init_ln(dim),
            "attn": init_attention(rng, dim, num_heads, qkv_bias),
            "norm2": init_ln(dim),
            "mlp": init_mlp(rng, dim, int(dim * mlp_ratio))}


def init_basic_layer(rng, in_chans, token_dim, downsample_ratio, depth,
                     num_heads_C, mlp_ratio, asf, qkv_bias=False):
    p = {"downsample_ratio": downsample_ratio, "ASF": asf}
    if downsample_ratio == 4:
        p["down"] = {"c1": init_conv(rng, in_chans, token_dim // 2, 3, bias=True),
                     "bn1": init_bn(token_dim // 2),
                     "c2": init_conv(rng, token_dim // 2, token_dim, 3, bias=True),
                     "bn2": init_bn(token_dim),
                     "c3": init_conv(rng, token_dim, token_dim, 3, bias=True)}
    elif downsample_ratio == 2:
        p["down"] = {"c1": init_conv(rng, in_chans, token_dim, 3, bias=False)}
    blocks = []
    for _ in range(depth):
        if asf:
            blocks.append(init_asf_encoder(rng, token_dim, num_heads_C, mlp_ratio, qkv_bias))
        else:
            blocks.append(init_block(rng, token_dim, num_heads_C, mlp_ratio, qkv_bias))
    p["blocks"] = blocks
    return p


def init_asf_former(rng, in_chans, stages, num_classes, token_dim,
                    downsample_ratio, depth, num_heads_C, mlp_ratio, ASF, qkv_bias=False):
    layers = []
    for i in range(stages):
        layers.append(init_basic_layer(rng, in_chans, token_dim[i], downsample_ratio[i],
                                       depth[i], num_heads_C[i], mlp_ratio, ASF[i], qkv_bias))
        in_chans = token_dim[i]
    return {"layers": layers, "head": init_linear(rng, token_dim[-1], num_classes)}


# ----------------------------------------------------------------------------
# forward passes
# ----------------------------------------------------------------------------
def attention_forward(x, p, ln, residual=None, qk_scale=None):
    """Attention with LN fused into the qkv GEMM and residual fused into proj."""
    B, N, C = x.shape
    nh = p["num_heads"]
    hd = C // nh
    scale = qk_scale if qk_scale is not None else hd ** -0.5
    qkv = linear(x, p["qkv"], ln=ln)                       # (B, N, 3C) bf16
    attn_out = fused_attention_qkv(qkv, nh, scale)         # (B, N, C) bf16, no transposes
    return linear(attn_out, p["proj"], residual=residual)


def mlp_forward(x, p, ln, residual=None):
    h = linear(x, p["fc1"], act="gelu", ln=ln)
    return linear(h, p["fc2"], residual=residual)


def conv_branch_hmcb_forward(x_tokens, H, W, p):
    """x_tokens: (B, HW, Cin) — already NHWC-flat, so no transposes needed."""
    B, HW, Cin = x_tokens.shape
    x2 = x_tokens.reshape(B * HW, Cin)
    h2 = pointwise_conv_bn_act(x2, p["pw1"], p["bn1"], act="gelu")       # (B*HW, hidden)
    hidden = h2.shape[1]
    h4 = h2.reshape(B, H, W, hidden)
    hd4 = depthwise3x3_bn_act_res(h4, p["dw"]["w"], p["bn2"], "gelu")    # res fused in-kernel
    o2 = pointwise_conv_bn_act(hd4.reshape(B * HW, hidden), p["pw2"], p["bn3"], act="none")
    return o2.reshape(B, HW, -1)


def fusion_adaptive_forward(x_attn, x_conv, p):
    pooled = jnp.mean((x_attn + x_conv).astype(jnp.float32), axis=1)     # (B, C)
    h = linear(pooled, p["fc1"], act="relu")
    logits = linear(h, p["fc2"], out_dtype=jnp.float32)                  # (B, 2)
    w = jax.nn.softmax(logits, axis=-1)
    w_attn = w[:, 0][:, None, None]
    w_conv = w[:, 1][:, None, None]
    x_fuse = (w_attn * x_attn.astype(jnp.float32)
              + w_conv * x_conv.astype(jnp.float32)).astype(jnp.bfloat16)
    return x_fuse, w_attn, w_conv


def asf_encoder_forward(x, p):
    B, HW, C = x.shape
    attn_dim = p["attn_dim"]
    s = int(round(np.sqrt(HW)))
    assert s * s == HW, "non-square token grid"
    x_attn_in = x[:, :, :attn_dim]
    x_conv_in = x[:, :, attn_dim:]
    x_attn = attention_forward(x_attn_in, p["attn"], ln=p["norm1"])
    x_conv = conv_branch_hmcb_forward(x_conv_in, s, s, p["conv_branch"])
    x_fuse, w_attn, w_conv = fusion_adaptive_forward(x_attn, x_conv, p["fuse"])
    x = linear(x_fuse, p["fc2"], residual=x)           # x + fc2(x_fuse), drop_path = identity
    x = mlp_forward(x, p["mlp"], ln=p["norm2"], residual=x)   # x + mlp(LN(x))
    return x, w_attn, w_conv


def block_forward(x, p):
    x = attention_forward(x, p["attn"], ln=p["norm1"], residual=x)
    x = mlp_forward(x, p["mlp"], ln=p["norm2"], residual=x)
    return x


def basic_layer_forward(x, p):
    # x: NHWC image (stage 0) or tokens (B, HW, C)
    if x.ndim == 3:
        B, HW, C = x.shape
        s = int(round(np.sqrt(HW)))
        assert s * s == HW, "non-square token grid"
        x = x.reshape(B, s, s, C)                       # tokens already NHWC-flat
    ds = p["down"]
    if p["downsample_ratio"] == 4:
        x = conv2d_nhwc(x, ds["c1"]["w"], ds["c1"]["b"], stride=2, padding=1,
                        act="relu", bn=ds["bn1"])
        x = conv2d_nhwc(x, ds["c2"]["w"], ds["c2"]["b"], stride=2, padding=1,
                        act="relu", bn=ds["bn2"])
        x = conv2d_nhwc(x, ds["c3"]["w"], ds["c3"]["b"], stride=1, padding=1)
    else:
        x = conv2d_nhwc(x, ds["c1"]["w"], None, stride=2, padding=1)
    B, H, W, C = x.shape
    x = x.reshape(B, H * W, C)
    for blk in p["blocks"]:
        if p["ASF"]:
            x, _, _ = asf_encoder_forward(x, blk)
        else:
            x = block_forward(x, blk)
    return x


def asf_former_forward(x_nchw, params):
    x = x_nchw.transpose(0, 2, 3, 1).astype(jnp.bfloat16)   # single NCHW->NHWC transpose
    for lp in params["layers"]:
        x = basic_layer_forward(x, lp)
    # TODO(synk): token-mean could be fused into the head GEMM; it is tiny here.
    feat = jnp.mean(x.astype(jnp.float32), axis=1)
    return linear(feat, params["head"], out_dtype=jnp.float32)


# ----------------------------------------------------------------------------
# main
# ----------------------------------------------------------------------------
if __name__ == "__main__":
    # Small config consistent with ASF_former_p (2 stages, ASF on stage 0 only,
    # matching the default's trailing non-ASF stage).
    B, IN_CHANS, IMG = 2, 3, 32
    STAGES = 2
    TOKEN_DIM = [32, 64]
    DOWNSAMPLE = [4, 2]
    DEPTH = [1, 1]
    HEADS_C = [2, 2]
    MLP_RATIO = 2.0
    ASF = [True, False]
    NUM_CLASSES = 10

    rng = RNG(1)
    params = init_asf_former(rng, IN_CHANS, STAGES, NUM_CLASSES, TOKEN_DIM,
                             DOWNSAMPLE, DEPTH, HEADS_C, MLP_RATIO, ASF)

    x = jax.random.normal(jax.random.PRNGKey(0), (B, IN_CHANS, IMG, IMG), jnp.float32)

    out = asf_former_forward(x, params)
    out = jax.block_until_ready(out)
    assert out.shape == (B, NUM_CLASSES), out.shape
    assert bool(jnp.all(jnp.isfinite(out)))
    print("KERNEL_OK")
</pallas_src>

<mosaic_0001>
module attributes {stable_mosaic.version = 11 : i64} {
  func.func @_mm_kernel(%arg0: i32, %arg1: i32, %arg2: i32, %arg3: memref<256x27xbf16, #tpu.memory_space<vmem>>, %arg4: memref<27x16xbf16, #tpu.memory_space<vmem>>, %arg5: memref<1x16xf32, #tpu.memory_space<vmem>>, %arg6: memref<256x16xbf16, #tpu.memory_space<vmem>>, %arg7: memref<256x16xf32, #tpu.memory_space<vmem>>) attributes {dimension_semantics = [#tpu.dimension_semantics<parallel>, #tpu.dimension_semantics<parallel>, #tpu.dimension_semantics<arbitrary>], iteration_bounds = array<i64: 2, 1, 1>, scalar_prefetch = 0 : i64, scratch_operands = 1 : i64, tpu.core_type = #tpu.core_type<tc>, window_params = [{transform_indices = @transform_0, window_bounds = array<i64: 256, 27>}, {transform_indices = @transform_1, window_bounds = array<i64: 27, 16>}, {transform_indices = @transform_2, window_bounds = array<i64: 1, 16>}, {transform_indices = @transform_3, window_bounds = array<i64: 256, 16>}]} {
    %c0_i32 = arith.constant 0 : i32
    %0 = arith.cmpi eq, %arg2, %c0_i32 : i32
    %1 = arith.extui %0 : i1 to i32
    %c0_i32_0 = arith.constant 0 : i32
    %2 = arith.cmpi ne, %1, %c0_i32_0 : i32
    scf.if %2 {
      %cst_10 = arith.constant 0.000000e+00 : f32
      %12 = vector.broadcast %cst_10 : f32 to vector<256x16xf32>
      %c0_11 = arith.constant 0 : index
      %c0_12 = arith.constant 0 : index
      %13 = vector.load %arg7[%c0_11, %c0_12] : memref<256x16xf32, #tpu.memory_space<vmem>>, vector<256x16xf32>
      tpu.vector_store %arg7[%c0_11, %c0_12], %12 {strides = array<i32>} : memref<256x16xf32, #tpu.memory_space<vmem>>, vector<256x16xf32>,
    } else {
    }
    %c0 = arith.constant 0 : index
    %c0_1 = arith.constant 0 : index
    %3 = vector.load %arg3[%c0, %c0_1] : memref<256x27xbf16, #tpu.memory_space<vmem>>, vector<256x27xbf16>
    %c0_2 = arith.constant 0 : index
    %c0_3 = arith.constant 0 : index
    %4 = vector.load %arg7[%c0_2, %c0_3] : memref<256x16xf32, #tpu.memory_space<vmem>>, vector<256x16xf32>
    %c0_4 = arith.constant 0 : index
    %c0_5 = arith.constant 0 : index
    %5 = vector.load %arg4[%c0_4, %c0_5] : memref<27x16xbf16, #tpu.memory_space<vmem>>, vector<27x16xbf16>
    %cst = arith.constant dense<0.000000e+00> : vector<256x16xf32>
    %6 = tpu.matmul %3, %5, %cst {dimension_numbers = #tpu.dot_dimension_numbers<[1], [0], [0], [1], [0, 0, 1, 1], [], []>} : vector<256x27xbf16>, vector<27x16xbf16>, vector<256x16xf32> -> vector<256x16xf32>
    %7 = arith.addf %4, %6 : vector<256x16xf32>
    %c0_6 = arith.constant 0 : index
    %c0_7 = arith.constant 0 : index
    %8 = vector.load %arg7[%c0_6, %c0_7] : memref<256x16xf32, #tpu.memory_space<vmem>>, vector<256x16xf32>
    tpu.vector_store %arg7[%c0_6, %c0_7], %7 {strides = array<i32>} : memref<256x16xf32, #tpu.memory_space<vmem>>, vector<256x16xf32>,
    %c0_i32_8 = arith.constant 0 : i32
    %9 = arith.cmpi eq, %arg2, %c0_i32_8 : i32
    %10 = arith.extui %9 : i1 to i32
    %c0_i32_9 = arith.constant 0 : i32
    %11 = arith.cmpi ne, %10, %c0_i32_9 : i32
    scf.if %11 {
      %c0_10 = arith.constant 0 : index
      %c0_11 = arith.constant 0 : index
      %12 = vector.load %arg7[%c0_10, %c0_11] : memref<256x16xf32, #tpu.memory_space<vmem>>, vector<256x16xf32>
      %c0_12 = arith.constant 0 : index
      %c0_13 = arith.constant 0 : index
      %13 = vector.load %arg5[%c0_12, %c0_13] : memref<1x16xf32, #tpu.memory_space<vmem>>, vector<1x16xf32>
      %14 = vector.broadcast %13 : vector<1x16xf32> to vector<256x16xf32>
      %15 = arith.addf %12, %14 : vector<256x16xf32>
      %cst_14 = arith.constant 0.000000e+00 : f32
      %16 = vector.broadcast %cst_14 : f32 to vector<256x16xf32>
      %17 = arith.maximumf %15, %16 : vector<256x16xf32>
      %18 = arith.truncf %17 : vector<256x16xf32> to vector<256x16xbf16>
      %c0_15 = arith.constant 0 : index
      %c0_16 = arith.constant 0 : index
      %19 = vector.load %arg6[%c0_15, %c0_16] : memref<256x16xbf16, #tpu.memory_space<vmem>>, vector<256x16xbf16>
      tpu.vector_store %arg6[%c0_15, %c0_16], %18 {strides = array<i32>} : memref<256x16xbf16, #tpu.memory_space<vmem>>, vector<256x16xbf16>,
    } else {
    }
    return
  }
  func.func @transform_0(%arg0: i32, %arg1: i32, %arg2: i32) -> (i32, i32) {
    %c0_i32 = arith.constant 0 : i32
    return %arg0, %arg2 : i32, i32
  }
  func.func @transform_1(%arg0: i32, %arg1: i32, %arg2: i32) -> (i32, i32) {
    %c0_i32 = arith.constant 0 : i32
    return %arg2, %arg1 : i32, i32
  }
  func.func @transform_2(%arg0: i32, %arg1: i32, %arg2: i32) -> (i32, i32) {
    %c0_i32 = arith.constant 0 : i32
    %c0_i32_0 = arith.constant 0 : i32
    return %c0_i32, %arg1 : i32, i32
  }
  func.func @transform_3(%arg0: i32, %arg1: i32, %arg2: i32) -> (i32, i32) {
    %c0_i32 = arith.constant 0 : i32
    return %arg0, %arg1 : i32, i32
  }
}

</mosaic_0001>

<llo_original>
// kernel: tpu_custom_call.1
$region0: #{tpu_custom_call.1}
  #allocation0 [shape = 'u32[]', space=smem, size = 0x4, offset = 0x4, fixed_abs, tag = 'smem constant byte address 0x4 - core index']
  #allocation1 [shape = 'u32[144,128]{1,0:T(1,128)}', space=vmem, size = 0x12000, scoped, tag = 'internal scratch']
  #allocation2 [shape = 'f32[256,16]{1,0:T(8,128)}', space=vmem, size = 0x20000, scoped, tag = 'scratch operand']
  %s0 = inlined_call_operand.vmem [shape: bf16[512,27], index: 0, kind: input, shape index: {}]
  %s1 = inlined_call_operand.vmem [shape: bf16[27,16], index: 1, kind: input, shape index: {}]
  %s2 = inlined_call_operand.vmem [shape: f32[1,16], index: 2, kind: input, shape index: {}]
  %s3 = inlined_call_operand.vmem [shape: bf16[512,16], index: 3, kind: output, shape index: {}]
  %s4 = sld [smem:[#allocation0]]
  $region53: #{tpu_custom_call.1} parent=0
    _
  %s6 = ssub.s32 1, %s4
  %s7 = scalar_select 0, %s6, %s4
  loop: start=0, step=1, limit=4
  $region2: #{tpu_custom_call.1} parent=0 // loop_pre_header
    _
  $region3: #{tpu_custom_call.1} parent=0 // loop_header
    %s9 = sphi 0, %s13
    %p10 = scmp.ge.s32.totalorder %s9, 4
    %s16 = sphi 0, %s35
    %s17 = sphi 0, %s31
    %s18 = sphi 0, %s27
    %s19 = sphi 0, %s16
    %s20 = sphi 0, %s17
    %s21 = sphi 0, %s18
    %s22 = sphi 0, %s19
    %s23 = sphi 0, %s20
    %s24 = sphi 0, %s21
    %s40 = sphi 0, %s42
    %s43 = sphi 0, %s40
    %s44 = sphi 0, %s43
    %s60 = sphi 0, %s44
    %s68 = sphi 0, %s70
    %s71 = sphi 0, %s68
    %s72 = sphi 0, %s71
    %s88 = sphi 0, %s72
    %s94 = sphi 0, %s96
    %s97 = sphi 0, %s94
    %s98 = sphi 0, %s97
    %s114 = sphi 0, %s98
    %s122 = sphi 0, %s124
    %s125 = sphi 0, %s122
    %s126 = sphi 0, %s125
    %s142 = sphi 0, %s126
  $region4: #{tpu_custom_call.1} parent=0 // loop_header_branch
    %12 = sbr.rel (%p10) target = $region8
  $region5: #{tpu_custom_call.1} parent=0 // loop_body
    %s14 = ssub.s32 %s9, 1
    %s15 = ssub.s32 %s9, 2
    %s25 = sadd.s32 1, %s18
    %p26 = scmp.ge.s32.totalorder %s25, 1
    %s27 = scalar_select %p26, 0, %s25
    %s28 = sadd.s32 1, %s17
    %s29 = scalar_select %p26, %s28, %s17
    %p30 = scmp.ge.s32.totalorder %s29, 1
    %s31 = scalar_select %p30, 0, %s29
    %s32 = sadd.s32 1, %s16
    %s33 = scalar_select %p30, %s32, %s16
    %p34 = scmp.ge.s32.totalorder %s33, 2
    %s35 = scalar_select %p34, 0, %s33
    %s36 = ssub.s32 %s16, %s35
    %s37 = ssub.s32 %s18, %s27
    %s38 = sor.u32 %s36, %s37
    %p39 = scmp.eq.s32.totalorder %s38, 0
    %s41 = sadd.s32 %s40, 1
    %s42 = scalar_select %p39, %s40, %s41
    %p45 = pneg %p39
    %p46 = scmp.eq.s32.totalorder %s9, 1
    %p47 = por %p45, %p46
    %p48 = scmp.ne.s32.totalorder %s40, %s43
    %p49 = scmp.eq.s32.totalorder %s9, 0
    %p50 = por %p48, %p49
    %p51 = scmp.ne.s32.totalorder %s40, %s43
    %p52 = scmp.eq.s32.totalorder %s14, 1
    %p53 = por %p51, %p52
    %p54 = scmp.ne.s32.totalorder %s43, %s44
    %p55 = scmp.eq.s32.totalorder %s14, 0
    %p56 = por %p54, %p55
    %p57 = scmp.ne.s32.totalorder %s43, %s44
    %p58 = scmp.eq.s32.totalorder %s15, 1
    %p59 = por %p57, %p58
    %p61 = scmp.ne.s32.totalorder %s44, %s60
    %p62 = scmp.eq.s32.totalorder %s15, 0
    %p63 = por %p61, %p62
    %s64 = ssub.s32 %s18, %s27
    %s65 = ssub.s32 %s17, %s31
    %s66 = sor.u32 %s64, %s65
    %p67 = scmp.eq.s32.totalorder %s66, 0
    %s69 = sadd.s32 %s68, 1
    %s70 = scalar_select %p67, %s68, %s69
    %p73 = pneg %p67
    %p74 = scmp.eq.s32.totalorder %s9, 1
    %p75 = por %p73, %p74
    %p76 = scmp.ne.s32.totalorder %s68, %s71
    %p77 = scmp.eq.s32.totalorder %s9, 0
    %p78 = por %p76, %p77
    %p79 = scmp.ne.s32.totalorder %s68, %s71
    %p80 = scmp.eq.s32.totalorder %s14, 1
    %p81 = por %p79, %p80
    %p82 = scmp.ne.s32.totalorder %s71, %s72
    %p83 = scmp.eq.s32.totalorder %s14, 0
    %p84 = por %p82, %p83
    %p85 = scmp.ne.s32.totalorder %s71, %s72
    %p86 = scmp.eq.s32.totalorder %s15, 1
    %p87 = por %p85, %p86
    %p89 = scmp.ne.s32.totalorder %s72, %s88
    %p90 = scmp.eq.s32.totalorder %s15, 0
    %p91 = por %p89, %p90
    %s92 = ssub.s32 %s17, %s31
    %p93 = scmp.eq.s32.totalorder %s92, 0
    %s95 = sadd.s32 %s94, 1
    %s96 = scalar_select %p93, %s94, %s95
    %p99 = pneg %p93
    %p100 = scmp.eq.s32.totalorder %s9, 1
    %p101 = por %p99, %p100
    %p102 = scmp.ne.s32.totalorder %s94, %s97
    %p103 = scmp.eq.s32.totalorder %s9, 0
    %p104 = por %p102, %p103
    %p105 = scmp.ne.s32.totalorder %s94, %s97
    %p106 = scmp.eq.s32.totalorder %s14, 1
    %p107 = por %p105, %p106
    %p108 = scmp.ne.s32.totalorder %s97, %s98
    %p109 = scmp.eq.s32.totalorder %s14, 0
    %p110 = por %p108, %p109
    %p111 = scmp.ne.s32.totalorder %s97, %s98
    %p112 = scmp.eq.s32.totalorder %s15, 1
    %p113 = por %p111, %p112
    %p115 = scmp.ne.s32.totalorder %s98, %s114
    %p116 = scmp.eq.s32.totalorder %s15, 0
    %p117 = por %p115, %p116
    %s118 = ssub.s32 %s16, %s35
    %s119 = ssub.s32 %s17, %s31
    %s120 = sor.u32 %s118, %s119
    %p121 = scmp.eq.s32.totalorder %s120, 0
    %s123 = sadd.s32 %s122, 1
    %s124 = scalar_select %p121, %s122, %s123
    %p127 = pneg %p121
    %p128 = scmp.eq.s32.totalorder %s9, 1
    %p129 = por %p127, %p128
    %p130 = scmp.ne.s32.totalorder %s122, %s125
    %p131 = scmp.eq.s32.totalorder %s9, 0
    %p132 = por %p130, %p131
    %p133 = scmp.ne.s32.totalorder %s122, %s125
    %p134 = scmp.eq.s32.totalorder %s14, 1
    %p135 = por %p133, %p134
    %p136 = scmp.ne.s32.totalorder %s125, %s126
    %p137 = scmp.eq.s32.totalorder %s14, 0
    %p138 = por %p136, %p137
    %p139 = scmp.ne.s32.totalorder %s125, %s126
    %p140 = scmp.eq.s32.totalorder %s15, 1
    %p141 = por %p139, %p140
    %p143 = scmp.ne.s32.totalorder %s126, %s142
    %p144 = scmp.eq.s32.totalorder %s15, 0
    %p145 = por %p143, %p144
    %p146 = scmp.le.s32.totalorder 1, %s9
    %p147 = scmp.lt.s32.totalorder %s9, 3
    %p148 = pnand %p146, %p147
    %p149 = pneg %p148
    // Predicated region
    $region9: #{tpu_custom_call.1} parent=5 // pred_check
      _
    $region10: #{tpu_custom_call.1} parent=5 // pred_check_branch
      %151 = sbr.rel (%p148) target = $region12
    $region11: #{tpu_custom_call.1} parent=5 // pred_region
      %s152 = ssub.s32 %s9, 1
      // Predicated region
      $region13: #{tpu_custom_call.1} parent=11 // pred_check
        %p153 = pneg %p84
      $region14: #{tpu_custom_call.1} parent=11 // pred_check_branch
        %155 = sbr.rel (%p153) target = $region16
      $region15: #{tpu_custom_call.1} parent=11 // pred_region
        %s156 = smul.u32 4, %s21
        %p157 = scmp.lt.s32.totalorder %s156, 3
        %s158 = scalar_select %p157, %s156, 3
        %p159 = scmp.lt.s32.totalorder %s20, 0
        %s160 = scalar_select %p159, %s20, 0
        %s161 = sadd.s32 %s160, %s158
        %s162 = smul.addr %s161, 4
        %s163 = scalar_lea.vmem %s1, %s162
        %s164 = smul.u32 4, %s21
      $region16: #{tpu_custom_call.1} parent=11 // pred_fallthru
        _
      // Predicated region
      $region17: #{tpu_custom_call.1} parent=11 // pred_check
        %p165 = pneg %p110
      $region18: #{tpu_custom_call.1} parent=11 // pred_check_branch
        %167 = sbr.rel (%p165) target = $region20
      $region19: #{tpu_custom_call.1} parent=11 // pred_region
        %p168 = scmp.lt.s32.totalorder %s20, 0
        %s169 = scalar_select %p168, %s20, 0
        %s170 = scalar_lea.vmem %s2, %s169
      $region20: #{tpu_custom_call.1} parent=11 // pred_fallthru
        _
    $region12: #{tpu_custom_call.1} parent=5 // pred_fallthru
      _
    %p171 = scmp.lt.s32.totalorder %s9, 2
    // Predicated region
    $region21: #{tpu_custom_call.1} parent=5 // pred_check
      %p172 = pneg %p171
    $region22: #{tpu_custom_call.1} parent=5 // pred_check_branch
      %174 = sbr.rel (%p172) target = $region24
    $region23: #{tpu_custom_call.1} parent=5 // pred_region
      // Predicated region
      $region25: #{tpu_custom_call.1} parent=23 // pred_check
        %p175 = pneg %p50
      $region26: #{tpu_custom_call.1} parent=23 // pred_check_branch
        %177 = sbr.rel (%p175) target = $region28
      $region27: #{tpu_custom_call.1} parent=23 // pred_region
        %s178 = smul.u32 32, %s16
        %p179 = scmp.lt.s32.totalorder %s178, 63
        %s180 = scalar_select %p179, %s178, 63
        %p181 = scmp.lt.s32.totalorder %s18, 0
        %s182 = scalar_select %p181, %s18, 0
        %s183 = sadd.s32 %s182, %s180
        %s184 = smul.addr %s183, 4
        %s185 = scalar_lea.vmem %s0, %s184
        %s186 = smul.u32 32, %s16
      $region28: #{tpu_custom_call.1} parent=23 // pred_fallthru
        _
    $region24: #{tpu_custom_call.1} parent=5 // pred_fallthru
      _
    %p187 = scmp.le.s32.totalorder 1, %s9
    %p188 = scmp.lt.s32.totalorder %s9, 3
    %p189 = pnand %p187, %p188
    %p190 = pneg %p189
    // Predicated region
    $region29: #{tpu_custom_call.1} parent=5 // pred_check
      _
    $region30: #{tpu_custom_call.1} parent=5 // pred_check_branch
      %192 = sbr.rel (%p189) target = $region32
    $region31: #{tpu_custom_call.1} parent=5 // pred_region
      %s193 = ssub.s32 %s9, 1
      %s194 = smul.u32 32, %s19
      %p195 = scmp.lt.s32.totalorder %s194, 63
      %s196 = scalar_select %p195, %s194, 63
      %p197 = scmp.lt.s32.totalorder %s21, 0
      %s198 = scalar_select %p197, %s21, 0
      %s199 = sadd.s32 %s198, %s196
      %s200 = smul.addr %s199, 4
      %s201 = scalar_lea.vmem %s0, %s200
      %p202 = pneg %p56
      %p203 = pneg %p53
      %s204 = smul.u32 4, %s21
      %p205 = scmp.lt.s32.totalorder %s204, 3
      %s206 = scalar_select %p205, %s204, 3
      %p207 = scmp.lt.s32.totalorder %s20, 0
      %s208 = scalar_select %p207, %s20, 0
      %s209 = sadd.s32 %s208, %s206
      %s210 = smul.addr %s209, 4
      %s211 = scalar_lea.vmem %s1, %s210
      %p212 = pneg %p84
      %p213 = pneg %p81
      %p214 = scmp.lt.s32.totalorder %s20, 0
      %s215 = scalar_select %p214, %s20, 0
      %s216 = scalar_lea.vmem %s2, %s215
      %p217 = pneg %p110
      %p218 = pneg %p107
      %p219 = pneg %p138
      %p220 = pneg %p135
      %s221 = smul.u32 32, %s19
      %p222 = scmp.lt.s32.totalorder %s221, 63
      %s223 = scalar_select %p222, %s221, 63
      %p224 = scmp.lt.s32.totalorder %s20, 0
      %s225 = scalar_select %p224, %s20, 0
      %s226 = sadd.s32 %s225, %s223
      %s227 = smul.addr %s226, 4
      %s228 = scalar_lea.vmem %s3, %s227
      %s229 = smul.u32 32, %s19
      %p230 = scmp.lt.s32.totalorder %s229, 63
      %s231 = scalar_select %p230, %s229, 63
      %p232 = scmp.lt.s32.totalorder %s21, 0
      %s233 = scalar_select %p232, %s21, 0
      %s234 = sadd.s32 %s233, %s231
      %s235 = smul.addr %s234, 4
      %s236 = scalar_lea.vmem %s0, %s235
      %s237 = smul.u32 32, %s19
      %s238 = smul.u32 4, %s21
      %p239 = scmp.lt.s32.totalorder %s238, 3
      %s240 = scalar_select %p239, %s238, 3
      %p241 = scmp.lt.s32.totalorder %s20, 0
      %s242 = scalar_select %p241, %s20, 0
      %s243 = sadd.s32 %s242, %s240
      %s244 = smul.addr %s243, 4
      %s245 = scalar_lea.vmem %s1, %s244
      %s246 = smul.u32 4, %s21
      %p247 = scmp.lt.s32.totalorder %s20, 0
      %s248 = scalar_select %p247, %s20, 0
      %s249 = scalar_lea.vmem %s2, %s248
      %s250 = smul.u32 32, %s19
      %p251 = scmp.lt.s32.totalorder %s250, 63
      %s252 = scalar_select %p251, %s250, 63
      %p253 = scmp.lt.s32.totalorder %s20, 0
      %s254 = scalar_select %p253, %s20, 0
      %s255 = sadd.s32 %s254, %s252
      %s256 = smul.addr %s255, 4
      %s257 = scalar_lea.vmem %s3, %s256
      %s258 = smul.u32 32, %s19
      %p260 = scmp.eq.s32.totalorder %s21, 0
      // Predicated region
      $region33: #{tpu_custom_call.1} parent=31 // pred_check
        %p261 = pneg %p260
      $region34: #{tpu_custom_call.1} parent=31 // pred_check_branch
        %263 = sbr.rel (%p261) target = $region36
      $region35: #{tpu_custom_call.1} parent=31 // pred_region
        %vm264 = vcmask 130048
        %265 = vst.msk [vmem:[#allocation2] sm:$0xff] %vm264, 0.0
        %266 = vst.msk [vmem:[#allocation2 + $0x8] sm:$0xff] %vm264, 0.0
        %267 = vst.msk [vmem:[#allocation2 + $0x10] sm:$0xff] %vm264, 0.0
        %268 = vst.msk [vmem:[#allocation2 + $0x18] sm:$0xff] %vm264, 0.0
        %269 = vst.msk [vmem:[#allocation2 + $0x20] sm:$0xff] %vm264, 0.0
        %270 = vst.msk [vmem:[#allocation2 + $0x28] sm:$0xff] %vm264, 0.0
        %271 = vst.msk [vmem:[#allocation2 + $0x30] sm:$0xff] %vm264, 0.0
        %272 = vst.msk [vmem:[#allocation2 + $0x38] sm:$0xff] %vm264, 0.0
        %273 = vst.msk [vmem:[#allocation2 + $0x40] sm:$0xff] %vm264, 0.0
        %274 = vst.msk [vmem:[#allocation2 + $0x48] sm:$0xff] %vm264, 0.0
        %275 = vst.msk [vmem:[#allocation2 + $0x50] sm:$0xff] %vm264, 0.0
        %276 = vst.msk [vmem:[#allocation2 + $0x58] sm:$0xff] %vm264, 0.0
        %277 = vst.msk [vmem:[#allocation2 + $0x60] sm:$0xff] %vm264, 0.0
        %278 = vst.msk [vmem:[#allocation2 + $0x68] sm:$0xff] %vm264, 0.0
        %279 = vst.msk [vmem:[#allocation2 + $0x70] sm:$0xff] %vm264, 0.0
        %280 = vst.msk [vmem:[#allocation2 + $0x78] sm:$0xff] %vm264, 0.0
        %281 = vst.msk [vmem:[#allocation2 + $0x80] sm:$0xff] %vm264, 0.0
        %282 = vst.msk [vmem:[#allocation2 + $0x88] sm:$0xff] %vm264, 0.0
        %283 = vst.msk [vmem:[#allocation2 + $0x90] sm:$0xff] %vm264, 0.0
        %284 = vst.msk [vmem:[#allocation2 + $0x98] sm:$0xff] %vm264, 0.0
        %285 = vst.msk [vmem:[#allocation2 + $0xa0] sm:$0xff] %vm264, 0.0
        %286 = vst.msk [vmem:[#allocation2 + $0xa8] sm:$0xff] %vm264, 0.0
        %287 = vst.msk [vmem:[#allocation2 + $0xb0] sm:$0xff] %vm264, 0.0
        %288 = vst.msk [vmem:[#allocation2 + $0xb8] sm:$0xff] %vm264, 0.0
        %289 = vst.msk [vmem:[#allocation2 + $0xc0] sm:$0xff] %vm264, 0.0
        %290 = vst.msk [vmem:[#allocation2 + $0xc8] sm:$0xff] %vm264, 0.0
        %291 = vst.msk [vmem:[#allocation2 + $0xd0] sm:$0xff] %vm264, 0.0
        %292 = vst.msk [vmem:[#allocation2 + $0xd8] sm:$0xff] %vm264, 0.0
        %293 = vst.msk [vmem:[#allocation2 + $0xe0] sm:$0xff] %vm264, 0.0
        %294 = vst.msk [vmem:[#allocation2 + $0xe8] sm:$0xff] %vm264, 0.0
        %295 = vst.msk [vmem:[#allocation2 + $0xf0] sm:$0xff] %vm264, 0.0
        %296 = vst.msk [vmem:[#allocation2 + $0xf8] sm:$0xff] %vm264, 0.0
      $region36: #{tpu_custom_call.1} parent=31 // pred_fallthru
        _
      %v297 = vld [vmem:[%s236] sm:$0xf]
      %v298 = vld [vmem:[%s236 + $0x4] sm:$0xf]
      %v299 = vld [vmem:[%s236 + $0x8] sm:$0xf]
      %v300 = vld [vmem:[%s236 + $0xc] sm:$0xf]
      %v301 = vld [vmem:[%s236 + $0x10] sm:$0xf]
      %v302 = vld [vmem:[%s236 + $0x14] sm:$0xf]
      %v303 = vld [vmem:[%s236 + $0x18] sm:$0xf]
      %v304 = vld [vmem:[%s236 + $0x1c] sm:$0xf]
      %v305 = vld [vmem:[%s236 + $0x20] sm:$0xf]
      %v306 = vld [vmem:[%s236 + $0x24] sm:$0xf]
      %v307 = vld [vmem:[%s236 + $0x28] sm:$0xf]
      %v308 = vld [vmem:[%s236 + $0x2c] sm:$0xf]
      %v309 = vld [vmem:[%s236 + $0x30] sm:$0xf]
      %v310 = vld [vmem:[%s236 + $0x34] sm:$0xf]
      %v311 = vld [vmem:[%s236 + $0x38] sm:$0xf]
      %v312 = vld [vmem:[%s236 + $0x3c] sm:$0xf]
      %v313 = vld [vmem:[%s236 + $0x40] sm:$0xf]
      %v314 = vld [vmem:[%s236 + $0x44] sm:$0xf]
      %v315 = vld [vmem:[%s236 + $0x48] sm:$0xf]
      %v316 = vld [vmem:[%s236 + $0x4c] sm:$0xf]
      %v317 = vld [vmem:[%s236 + $0x50] sm:$0xf]
      %v318 = vld [vmem:[%s236 + $0x54] sm:$0xf]
      %v319 = vld [vmem:[%s236 + $0x58] sm:$0xf]
      %v320 = vld [vmem:[%s236 + $0x5c] sm:$0xf]
      %v321 = vld [vmem:[%s236 + $0x60] sm:$0xf]
      %v322 = vld [vmem:[%s236 + $0x64] sm:$0xf]
      %v323 = vld [vmem:[%s236 + $0x68] sm:$0xf]
      %v324 = vld [vmem:[%s236 + $0x6c] sm:$0xf]
      %v325 = vld [vmem:[%s236 + $0x70] sm:$0xf]
      %v326 = vld [vmem:[%s236 + $0x74] sm:$0xf]
      %v327 = vld [vmem:[%s236 + $0x78] sm:$0xf]
      %v328 = vld [vmem:[%s236 + $0x7c] sm:$0xf]
      %v329 = vld [vmem:[#allocation2] sm:$0xff]
      %v330 = vld [vmem:[#allocation2 + $0x8] sm:$0xff]
      %v331 = vld [vmem:[#allocation2 + $0x10] sm:$0xff]
      %v332 = vld [vmem:[#allocation2 + $0x18] sm:$0xff]
      %v333 = vld [vmem:[#allocation2 + $0x20] sm:$0xff]
      %v334 = vld [vmem:[#allocation2 + $0x28] sm:$0xff]
      %v335 = vld [vmem:[#allocation2 + $0x30] sm:$0xff]
      %v336 = vld [vmem:[#allocation2 + $0x38] sm:$0xff]
      %v337 = vld [vmem:[#allocation2 + $0x40] sm:$0xff]
      %v338 = vld [vmem:[#allocation2 + $0x48] sm:$0xff]
      %v339 = vld [vmem:[#allocation2 + $0x50] sm:$0xff]
      %v340 = vld [vmem:[#allocation2 + $0x58] sm:$0xff]
      %v341 = vld [vmem:[#allocation2 + $0x60] sm:$0xff]
      %v342 = vld [vmem:[#allocation2 + $0x68] sm:$0xff]
      %v343 = vld [vmem:[#allocation2 + $0x70] sm:$0xff]
      %v344 = vld [vmem:[#allocation2 + $0x78] sm:$0xff]
      %v345 = vld [vmem:[#allocation2 + $0x80] sm:$0xff]
      %v346 = vld [vmem:[#allocation2 + $0x88] sm:$0xff]
      %v347 = vld [vmem:[#allocation2 + $0x90] sm:$0xff]
      %v348 = vld [vmem:[#allocation2 + $0x98] sm:$0xff]
      %v349 = vld [vmem:[#allocation2 + $0xa0] sm:$0xff]
      %v350 = vld [vmem:[#allocation2 + $0xa8] sm:$0xff]
      %v351 = vld [vmem:[#allocation2 + $0xb0] sm:$0xff]
      %v352 = vld [vmem:[#allocation2 + $0xb8] sm:$0xff]
      %v353 = vld [vmem:[#allocation2 + $0xc0] sm:$0xff]
      %v354 = vld [vmem:[#allocation2 + $0xc8] sm:$0xff]
      %v355 = vld [vmem:[#allocation2 + $0xd0] sm:$0xff]
      %v356 = vld [vmem:[#allocation2 + $0xd8] sm:$0xff]
      %v357 = vld [vmem:[#allocation2 + $0xe0] sm:$0xff]
      %v358 = vld [vmem:[#allocation2 + $0xe8] sm:$0xff]
      %v359 = vld [vmem:[#allocation2 + $0xf0] sm:$0xff]
      %v360 = vld [vmem:[#allocation2 + $0xf8] sm:$0xff]
      %v361 = vld [vmem:[%s245] sm:$0xf]
      %v362 = vld [vmem:[%s245 + $0x4] sm:$0xf]
      %v363 = vld [vmem:[%s245 + $0x8] sm:$0xf]
      %v364 = vld [vmem:[%s245 + $0xc] sm:$0x3]
      %v397 = vunpack.c.l.b16 %v297
      %v398 = vunpack.c.l.b16 %v298
      %v399 = vunpack.c.l.b16 %v299
      %v400 = vunpack.c.l.b16 %v300
      %v401 = vunpack.c.l.b16 %v301
      %v402 = vunpack.c.l.b16 %v302
      %v403 = vunpack.c.l.b16 %v303
      %v404 = vunpack.c.l.b16 %v304
      %v405 = vunpack.c.l.b16 %v305
      %v406 = vunpack.c.l.b16 %v306
      %v407 = vunpack.c.l.b16 %v307
      %v408 = vunpack.c.l.b16 %v308
      %v409 = vunpack.c.l.b16 %v309
      %v410 = vunpack.c.l.b16 %v310
      %v411 = vunpack.c.l.b16 %v311
      %v412 = vunpack.c.l.b16 %v312
      %v413 = vunpack.c.l.b16 %v313
      %v414 = vunpack.c.l.b16 %v314
      %v415 = vunpack.c.l.b16 %v315
      %v416 = vunpack.c.l.b16 %v316
      %v417 = vunpack.c.l.b16 %v317
      %v418 = vunpack.c.l.b16 %v318
      %v419 = vunpack.c.l.b16 %v319
      %v420 = vunpack.c.l.b16 %v320
      %v421 = vunpack.c.l.b16 %v321
      %v422 = vunpack.c.l.b16 %v322
      %v423 = vunpack.c.l.b16 %v323
      %v424 = vunpack.c.l.b16 %v324
      %v425 = vunpack.c.l.b16 %v325
      %v426 = vunpack.c.l.b16 %v326
      %v427 = vunpack.c.l.b16 %v327
      %v428 = vunpack.c.l.b16 %v328
      %v429 = vpack.c.b16 %v398, %v397
      %v430 = vpack.c.b16 %v400, %v399
      %v431 = vpack.c.b16 %v402, %v401
      %v432 = vpack.c.b16 %v404, %v403
      %v433 = vpack.c.b16 %v406, %v405
      %v434 = vpack.c.b16 %v408, %v407
      %v435 = vpack.c.b16 %v410, %v409
      %v436 = vpack.c.b16 %v412, %v411
      %v437 = vpack.c.b16 %v414, %v413
      %v438 = vpack.c.b16 %v416, %v415
      %v439 = vpack.c.b16 %v418, %v417
      %v440 = vpack.c.b16 %v420, %v419
      %v441 = vpack.c.b16 %v422, %v421
      %v442 = vpack.c.b16 %v424, %v423
      %v443 = vpack.c.b16 %v426, %v425
      %v444 = vpack.c.b16 %v428, %v427
      %v449 = vunpack.c.l.b16 %v361
      %v450 = vunpack.c.l.b16 %v362
      %v451 = vunpack.c.l.b16 %v363
      %v452 = vunpack.c.l.b16 %v364
      %v453 = vpack.c.b16 %v450, %v449
      %v454 = vpack.c.b16 %v452, %v451
      %vm456 = vcmask 220160
      %v458 = vsel %vm456, %v429, 0
      %v461 = vsel %vm456, %v430, 0
      %v464 = vsel %vm456, %v431, 0
      %v467 = vsel %vm456, %v432, 0
      %v470 = vsel %vm456, %v433, 0
      %v473 = vsel %vm456, %v434, 0
      %v476 = vsel %vm456, %v435, 0
      %v479 = vsel %vm456, %v436, 0
      %v482 = vsel %vm456, %v437, 0
      %v485 = vsel %vm456, %v438, 0
      %v488 = vsel %vm456, %v439, 0
      %v491 = vsel %vm456, %v440, 0
      %v494 = vsel %vm456, %v441, 0
      %v497 = vsel %vm456, %v442, 0
      %v500 = vsel %vm456, %v443, 0
      %v503 = vsel %vm456, %v444, 0
      %vm505 = vcmask 1044480
      %vm506 = vcmask 1045504
      %v507 = vsel %vm505, 4294967295, 65535
      %v508 = vsel %vm506, %v507, 0
      %v510 = vand.u32 %v454, %v508
      %512 = vmatprep.subr.bf16.mxu0 0
      %513 = vmatpush1.bf16.msra.mxu0 0
      %514 = vmatprep.subr.bf16.mxu0 0
      %515 = vmatpush1.bf16.msra.mxu0 0
      %516 = vmatprep.subr.bf16.mxu0 0
      %517 = vmatpush1.bf16.msra.mxu0 0
      %518 = vmatprep.subr.bf16.mxu0 0
      %519 = vmatpush1.bf16.msra.mxu0 0
      %520 = vmatprep.subr.bf16.mxu0 0
      %521 = vmatpush1.bf16.msra.mxu0 0
      %522 = vmatprep.subr.bf16.mxu0 0
      %523 = vmatpush1.bf16.msra.mxu0 0
      %524 = vmatprep.subr.bf16.mxu0 0
      %525 = vmatpush1.bf16.msra.mxu0 %v510
      %526 = vmatprep.subr.bf16.mxu0 0
      %527 = vmatpush1.bf16.msra.mxu0 %v453
      %528 = vmatprep.subr.bf16.mxu0 0
      %529 = vmatpush2.bf16.msra.mxu0 0
      %530 = vmatprep.subr.bf16.mxu0 0
      %531 = vmatpush2.bf16.msra.mxu0 0
      %532 = vmatprep.subr.bf16.mxu0 0
      %533 = vmatpush2.bf16.msra.mxu0 0
      %534 = vmatprep.subr.bf16.mxu0 0
      %535 = vmatpush2.bf16.msra.mxu0 0
      %536 = vmatprep.subr.bf16.mxu0 0
      %537 = vmatpush2.bf16.msra.mxu0 0
      %538 = vmatprep.subr.bf16.mxu0 0
      %539 = vmatpush2.bf16.msra.mxu0 0
      %540 = vmatprep.subr.bf16.mxu0 0
      %541 = vmatpush2.bf16.msra.mxu0 0
      %542 = vmatprep.subr.bf16.mxu0 0
      %543 = vmatpush2.bf16.msra.mxu0 0
      %544 = vmatprep.mubr.bf16.mxu0 0
      %545 = vmatmul.mubr.bf16.gmra.mxu0 %v458
      %v546 = vpop.f32.mrf.mxu0
      %v547 = vadd.f32 0.0, %v546
      %v548 = vpop.f32.mrf.mxu0
      %v549 = vpop.f32.mrf.mxu0
      %v550 = vadd.f32 0.0, %v549
      %v551 = vpop.f32.mrf.mxu0
      %552 = vmatprep.mubr.bf16.mxu0 0
      %553 = vmatmul.mubr.bf16.gmra.mxu0 %v461
      %v554 = vpop.f32.mrf.mxu0
      %v555 = vadd.f32 0.0, %v554
      %v556 = vpop.f32.mrf.mxu0
      %v557 = vpop.f32.mrf.mxu0
      %v558 = vadd.f32 0.0, %v557
      %v559 = vpop.f32.mrf.mxu0
      %560 = vmatprep.mubr.bf16.mxu0 0
      %561 = vmatmul.mubr.bf16.gmra.mxu0 %v464
      %v562 = vpop.f32.mrf.mxu0
      %v563 = vadd.f32 0.0, %v562
      %v564 = vpop.f32.mrf.mxu0
      %v565 = vpop.f32.mrf.mxu0
      %v566 = vadd.f32 0.0, %v565
      %v567 = vpop.f32.mrf.mxu0
      %568 = vmatprep.mubr.bf16.mxu0 0
      %569 = vmatmul.mubr.bf16.gmra.mxu0 %v467
      %v570 = vpop.f32.mrf.mxu0
      %v571 = vadd.f32 0.0, %v570
      %v572 = vpop.f32.mrf.mxu0
      %v573 = vpop.f32.mrf.mxu0
      %v574 = vadd.f32 0.0, %v573
      %v575 = vpop.f32.mrf.mxu0
      %576 = vmatprep.mubr.bf16.mxu0 0
      %577 = vmatmul.mubr.bf16.gmra.mxu0 %v470
      %v578 = vpop.f32.mrf.mxu0
      %v579 = vadd.f32 0.0, %v578
      %v580 = vpop.f32.mrf.mxu0
      %v581 = vpop.f32.mrf.mxu0
      %v582 = vadd.f32 0.0, %v581
      %v583 = vpop.f32.mrf.mxu0
      %584 = vmatprep.mubr.bf16.mxu0 0
      %585 = vmatmul.mubr.bf16.gmra.mxu0 %v473
      %v586 = vpop.f32.mrf.mxu0
      %v587 = vadd.f32 0.0, %v586
      %v588 = vpop.f32.mrf.mxu0
      %v589 = vpop.f32.mrf.mxu0
      %v590 = vadd.f32 0.0, %v589
      %v591 = vpop.f32.mrf.mxu0
      %592 = vmatprep.mubr.bf16.mxu0 0
      %593 = vmatmul.mubr.bf16.gmra.mxu0 %v476
      %v594 = vpop.f32.mrf.mxu0
      %v595 = vadd.f32 0.0, %v594
      %v596 = vpop.f32.mrf.mxu0
      %v597 = vpop.f32.mrf.mxu0
      %v598 = vadd.f32 0.0, %v597
      %v599 = vpop.f32.mrf.mxu0
      %600 = vmatprep.mubr.bf16.mxu0 0
      %601 = vmatmul.mubr.bf16.gmra.mxu0 %v479
      %v602 = vpop.f32.mrf.mxu0
      %v603 = vadd.f32 0.0, %v602
      %v604 = vpop.f32.mrf.mxu0
      %v605 = vpop.f32.mrf.mxu0
      %v606 = vadd.f32 0.0, %v605
      %v607 = vpop.f32.mrf.mxu0
      %608 = vmatprep.mubr.bf16.mxu0 0
      %609 = vmatmul.mubr.bf16.gmra.mxu0 %v482
      %v610 = vpop.f32.mrf.mxu0
      %v611 = vadd.f32 0.0, %v610
      %v612 = vpop.f32.mrf.mxu0
      %v613 = vpop.f32.mrf.mxu0
      %v614 = vadd.f32 0.0, %v613
      %v615 = vpop.f32.mrf.mxu0
      %616 = vmatprep.mubr.bf16.mxu0 0
      %617 = vmatmul.mubr.bf16.gmra.mxu0 %v485
      %v618 = vpop.f32.mrf.mxu0
      %v619 = vadd.f32 0.0, %v618
      %v620 = vpop.f32.mrf.mxu0
      %v621 = vpop.f32.mrf.mxu0
      %v622 = vadd.f32 0.0, %v621
      %v623 = vpop.f32.mrf.mxu0
      %624 = vmatprep.mubr.bf16.mxu0 0
      %625 = vmatmul.mubr.bf16.gmra.mxu0 %v488
      %v626 = vpop.f32.mrf.mxu0
      %v627 = vadd.f32 0.0, %v626
      %v628 = vpop.f32.mrf.mxu0
      %v629 = vpop.f32.mrf.mxu0
      %v630 = vadd.f32 0.0, %v629
      %v631 = vpop.f32.mrf.mxu0
      %632 = vmatprep.mubr.bf16.mxu0 0
      %633 = vmatmul.mubr.bf16.gmra.mxu0 %v491
      %v634 = vpop.f32.mrf.mxu0
      %v635 = vadd.f32 0.0, %v634
      %v636 = vpop.f32.mrf.mxu0
      %v637 = vpop.f32.mrf.mxu0
      %v638 = vadd.f32 0.0, %v637
      %v639 = vpop.f32.mrf.mxu0
      %640 = vmatprep.mubr.bf16.mxu0 0
      %641 = vmatmul.mubr.bf16.gmra.mxu0 %v494
      %v642 = vpop.f32.mrf.mxu0
      %v643 = vadd.f32 0.0, %v642
      %v644 = vpop.f32.mrf.mxu0
      %v645 = vpop.f32.mrf.mxu0
      %v646 = vadd.f32 0.0, %v645
      %v647 = vpop.f32.mrf.mxu0
      %648 = vmatprep.mubr.bf16.mxu0 0
      %649 = vmatmul.mubr.bf16.gmra.mxu0 %v497
      %v650 = vpop.f32.mrf.mxu0
      %v651 = vadd.f32 0.0, %v650
      %v652 = vpop.f32.mrf.mxu0
      %v653 = vpop.f32.mrf.mxu0
      %v654 = vadd.f32 0.0, %v653
      %v655 = vpop.f32.mrf.mxu0
      %656 = vmatprep.mubr.bf16.mxu0 0
      %657 = vmatmul.mubr.bf16.gmra.mxu0 %v500
      %v658 = vpop.f32.mrf.mxu0
      %v659 = vadd.f32 0.0, %v658
      %v660 = vpop.f32.mrf.mxu0
      %v661 = vpop.f32.mrf.mxu0
      %v662 = vadd.f32 0.0, %v661
      %v663 = vpop.f32.mrf.mxu0
      %664 = vmatprep.mubr.bf16.mxu0 0
      %665 = vmatmul.mubr.bf16.gmra.mxu0 %v503
      %v666 = vpop.f32.mrf.mxu0
      %v667 = vadd.f32 0.0, %v666
      %v668 = vpop.f32.mrf.mxu0
      %v669 = vpop.f32.mrf.mxu0
      %v670 = vadd.f32 0.0, %v669
      %v671 = vpop.f32.mrf.mxu0
      %672 = vdwg.mxu0
      %v673 = vadd.f32 %v329, %v547
      %v674 = vadd.f32 %v330, %v550
      %v675 = vadd.f32 %v331, %v555
      %v676 = vadd.f32 %v332, %v558
      %v677 = vadd.f32 %v333, %v563
      %v678 = vadd.f32 %v334, %v566
      %v679 = vadd.f32 %v335, %v571
      %v680 = vadd.f32 %v336, %v574
      %v681 = vadd.f32 %v337, %v579
      %v682 = vadd.f32 %v338, %v582
      %v683 = vadd.f32 %v339, %v587
      %v684 = vadd.f32 %v340, %v590
      %v685 = vadd.f32 %v341, %v595
      %v686 = vadd.f32 %v342, %v598
      %v687 = vadd.f32 %v343, %v603
      %v688 = vadd.f32 %v344, %v606
      %v689 = vadd.f32 %v345, %v611
      %v690 = vadd.f32 %v346, %v614
      %v691 = vadd.f32 %v347, %v619
      %v692 = vadd.f32 %v348, %v622
      %v693 = vadd.f32 %v349, %v627
      %v694 = vadd.f32 %v350, %v630
      %v695 = vadd.f32 %v351, %v635
      %v696 = vadd.f32 %v352, %v638
      %v697 = vadd.f32 %v353, %v643
      %v698 = vadd.f32 %v354, %v646
      %v699 = vadd.f32 %v355, %v651
      %v700 = vadd.f32 %v356, %v654
      %v701 = vadd.f32 %v357, %v659
      %v702 = vadd.f32 %v358, %v662
      %v703 = vadd.f32 %v359, %v667
      %v704 = vadd.f32 %v360, %v670
      %vm705 = vcmask 130048
      %706 = vst.msk [vmem:[#allocation2] sm:$0xff] %vm705, %v673
      %707 = vst.msk [vmem:[#allocation2 + $0x8] sm:$0xff] %vm705, %v674
      %708 = vst.msk [vmem:[#allocation2 + $0x10] sm:$0xff] %vm705, %v675
      %709 = vst.msk [vmem:[#allocation2 + $0x18] sm:$0xff] %vm705, %v676
      %710 = vst.msk [vmem:[#allocation2 + $0x20] sm:$0xff] %vm705, %v677
      %711 = vst.msk [vmem:[#allocation2 + $0x28] sm:$0xff] %vm705, %v678
      %712 = vst.msk [vmem:[#allocation2 + $0x30] sm:$0xff] %vm705, %v679
      %713 = vst.msk [vmem:[#allocation2 + $0x38] sm:$0xff] %vm705, %v680
      %714 = vst.msk [vmem:[#allocation2 + $0x40] sm:$0xff] %vm705, %v681
      %715 = vst.msk [vmem:[#allocation2 + $0x48] sm:$0xff] %vm705, %v682
      %716 = vst.msk [vmem:[#allocation2 + $0x50] sm:$0xff] %vm705, %v683
      %717 = vst.msk [vmem:[#allocation2 + $0x58] sm:$0xff] %vm705, %v684
      %718 = vst.msk [vmem:[#allocation2 + $0x60] sm:$0xff] %vm705, %v685
      %719 = vst.msk [vmem:[#allocation2 + $0x68] sm:$0xff] %vm705, %v686
      %720 = vst.msk [vmem:[#allocation2 + $0x70] sm:$0xff] %vm705, %v687
      %721 = vst.msk [vmem:[#allocation2 + $0x78] sm:$0xff] %vm705, %v688
      %722 = vst.msk [vmem:[#allocation2 + $0x80] sm:$0xff] %vm705, %v689
      %723 = vst.msk [vmem:[#allocation2 + $0x88] sm:$0xff] %vm705, %v690
      %724 = vst.msk [vmem:[#allocation2 + $0x90] sm:$0xff] %vm705, %v691
      %725 = vst.msk [vmem:[#allocation2 + $0x98] sm:$0xff] %vm705, %v692
      %726 = vst.msk [vmem:[#allocation2 + $0xa0] sm:$0xff] %vm705, %v693
      %727 = vst.msk [vmem:[#allocation2 + $0xa8] sm:$0xff] %vm705, %v694
      %728 = vst.msk [vmem:[#allocation2 + $0xb0] sm:$0xff] %vm705, %v695
      %729 = vst.msk [vmem:[#allocation2 + $0xb8] sm:$0xff] %vm705, %v696
      %730 = vst.msk [vmem:[#allocation2 + $0xc0] sm:$0xff] %vm705, %v697
      %731 = vst.msk [vmem:[#allocation2 + $0xc8] sm:$0xff] %vm705, %v698
      %732 = vst.msk [vmem:[#allocation2 + $0xd0] sm:$0xff] %vm705, %v699
      %733 = vst.msk [vmem:[#allocation2 + $0xd8] sm:$0xff] %vm705, %v700
      %734 = vst.msk [vmem:[#allocation2 + $0xe0] sm:$0xff] %vm705, %v701
      %735 = vst.msk [vmem:[#allocation2 + $0xe8] sm:$0xff] %vm705, %v702
      %736 = vst.msk [vmem:[#allocation2 + $0xf0] sm:$0xff] %vm705, %v703
      %737 = vst.msk [vmem:[#allocation2 + $0xf8] sm:$0xff] %vm705, %v704
      // Predicated region
      $region37: #{tpu_custom_call.1} parent=31 // pred_check
        %p738 = pneg %p260
      $region38: #{tpu_custom_call.1} parent=31 // pred_check_branch
        %740 = sbr.rel (%p738) target = $region40
      $region39: #{tpu_custom_call.1} parent=31 // pred_region
        %v741 = vld [vmem:[#allocation2] sm:$0xff]
        %v742 = vld [vmem:[#allocation2 + $0x8] sm:$0xff]
        %v743 = vld [vmem:[#allocation2 + $0x10] sm:$0xff]
        %v744 = vld [vmem:[#allocation2 + $0x18] sm:$0xff]
        %v745 = vld [vmem:[#allocation2 + $0x20] sm:$0xff]
        %v746 = vld [vmem:[#allocation2 + $0x28] sm:$0xff]
        %v747 = vld [vmem:[#allocation2 + $0x30] sm:$0xff]
        %v748 = vld [vmem:[#allocation2 + $0x38] sm:$0xff]
        %v749 = vld [vmem:[#allocation2 + $0x40] sm:$0xff]
        %v750 = vld [vmem:[#allocation2 + $0x48] sm:$0xff]
        %v751 = vld [vmem:[#allocation2 + $0x50] sm:$0xff]
        %v752 = vld [vmem:[#allocation2 + $0x58] sm:$0xff]
        %v753 = vld [vmem:[#allocation2 + $0x60] sm:$0xff]
        %v754 = vld [vmem:[#allocation2 + $0x68] sm:$0xff]
        %v755 = vld [vmem:[#allocation2 + $0x70] sm:$0xff]
        %v756 = vld [vmem:[#allocation2 + $0x78] sm:$0xff]
        %v757 = vld [vmem:[#allocation2 + $0x80] sm:$0xff]
        %v758 = vld [vmem:[#allocation2 + $0x88] sm:$0xff]
        %v759 = vld [vmem:[#allocation2 + $0x90] sm:$0xff]
        %v760 = vld [vmem:[#allocation2 + $0x98] sm:$0xff]
        %v761 = vld [vmem:[#allocation2 + $0xa0] sm:$0xff]
        %v762 = vld [vmem:[#allocation2 + $0xa8] sm:$0xff]
        %v763 = vld [vmem:[#allocation2 + $0xb0] sm:$0xff]
        %v764 = vld [vmem:[#allocation2 + $0xb8] sm:$0xff]
        %v765 = vld [vmem:[#allocation2 + $0xc0] sm:$0xff]
        %v766 = vld [vmem:[#allocation2 + $0xc8] sm:$0xff]
        %v767 = vld [vmem:[#allocation2 + $0xd0] sm:$0xff]
        %v768 = vld [vmem:[#allocation2 + $0xd8] sm:$0xff]
        %v769 = vld [vmem:[#allocation2 + $0xe0] sm:$0xff]
        %v770 = vld [vmem:[#allocation2 + $0xe8] sm:$0xff]
        %v771 = vld [vmem:[#allocation2 + $0xf0] sm:$0xff]
        %v772 = vld [vmem:[#allocation2 + $0xf8] sm:$0xff]
        %v773 = vld [vmem:[%s249] sm:$0x1]
        %v775 = vlaneseq
        %v776 = vshrl.u32 %v775, 7
        %v777 = vsub.s32 0, %v776
        %v778 = vrot.slane %v773, %v777
        %v780 = vadd.f32 %v741, %v778
        %v781 = vadd.f32 %v742, %v778
        %v782 = vadd.f32 %v743, %v778
        %v783 = vadd.f32 %v744, %v778
        %v784 = vadd.f32 %v745, %v778
        %v785 = vadd.f32 %v746, %v778
        %v786 = vadd.f32 %v747, %v778
        %v787 = vadd.f32 %v748, %v778
        %v788 = vadd.f32 %v749, %v778
        %v789 = vadd.f32 %v750, %v778
        %v790 = vadd.f32 %v751, %v778
        %v791 = vadd.f32 %v752, %v778
        %v792 = vadd.f32 %v753, %v778
        %v793 = vadd.f32 %v754, %v778
        %v794 = vadd.f32 %v755, %v778
        %v795 = vadd.f32 %v756, %v778
        %v796 = vadd.f32 %v757, %v778
        %v797 = vadd.f32 %v758, %v778
        %v798 = vadd.f32 %v759, %v778
        %v799 = vadd.f32 %v760, %v778
        %v800 = vadd.f32 %v761, %v778
        %v801 = vadd.f32 %v762, %v778
        %v802 = vadd.f32 %v763, %v778
        %v803 = vadd.f32 %v764, %v778
        %v804 = vadd.f32 %v765, %v778
        %v805 = vadd.f32 %v766, %v778
        %v806 = vadd.f32 %v767, %v778
        %v807 = vadd.f32 %v768, %v778
        %v808 = vadd.f32 %v769, %v778
        %v809 = vadd.f32 %v770, %v778
        %v810 = vadd.f32 %v771, %v778
        %v811 = vadd.f32 %v772, %v778
        %v812 = vmax.f32 %v780, 0.0
        %v813 = vmax.f32 %v781, 0.0
        %v814 = vmax.f32 %v782, 0.0
        %v815 = vmax.f32 %v783, 0.0
        %v816 = vmax.f32 %v784, 0.0
        %v817 = vmax.f32 %v785, 0.0
        %v818 = vmax.f32 %v786, 0.0
        %v819 = vmax.f32 %v787, 0.0
        %v820 = vmax.f32 %v788, 0.0
        %v821 = vmax.f32 %v789, 0.0
        %v822 = vmax.f32 %v790, 0.0
        %v823 = vmax.f32 %v791, 0.0
        %v824 = vmax.f32 %v792, 0.0
        %v825 = vmax.f32 %v793, 0.0
        %v826 = vmax.f32 %v794, 0.0
        %v827 = vmax.f32 %v795, 0.0
        %v828 = vmax.f32 %v796, 0.0
        %v829 = vmax.f32 %v797, 0.0
        %v830 = vmax.f32 %v798, 0.0
        %v831 = vmax.f32 %v799, 0.0
        %v832 = vmax.f32 %v800, 0.0
        %v833 = vmax.f32 %v801, 0.0
        %v834 = vmax.f32 %v802, 0.0
        %v835 = vmax.f32 %v803, 0.0
        %v836 = vmax.f32 %v804, 0.0
        %v837 = vmax.f32 %v805, 0.0
        %v838 = vmax.f32 %v806, 0.0
        %v839 = vmax.f32 %v807, 0.0
        %v840 = vmax.f32 %v808, 0.0
        %v841 = vmax.f32 %v809, 0.0
        %v842 = vmax.f32 %v810, 0.0
        %v843 = vmax.f32 %v811, 0.0
        %v844 = vpack.c.bf16 %v813, %v812
        %v845 = vpack.c.bf16 %v815, %v814
        %v846 = vpack.c.bf16 %v817, %v816
        %v847 = vpack.c.bf16 %v819, %v818
        %v848 = vpack.c.bf16 %v821, %v820
        %v849 = vpack.c.bf16 %v823, %v822
        %v850 = vpack.c.bf16 %v825, %v824
        %v851 = vpack.c.bf16 %v827, %v826
        %v852 = vpack.c.bf16 %v829, %v828
        %v853 = vpack.c.bf16 %v831, %v830
        %v854 = vpack.c.bf16 %v833, %v832
        %v855 = vpack.c.bf16 %v835, %v834
        %v856 = vpack.c.bf16 %v837, %v836
        %v857 = vpack.c.bf16 %v839, %v838
        %v858 = vpack.c.bf16 %v841, %v840
        %v859 = vpack.c.bf16 %v843, %v842
        %v876 = vunpack.c.l.b16 %v844
        %v877 = vunpack.c.h.b16 %v844
        %v878 = vunpack.c.l.b16 %v845
        %v879 = vunpack.c.h.b16 %v845
        %v880 = vunpack.c.l.b16 %v846
        %v881 = vunpack.c.h.b16 %v846
        %v882 = vunpack.c.l.b16 %v847
        %v883 = vunpack.c.h.b16 %v847
        %v884 = vunpack.c.l.b16 %v848
        %v885 = vunpack.c.h.b16 %v848
        %v886 = vunpack.c.l.b16 %v849
        %v887 = vunpack.c.h.b16 %v849
        %v888 = vunpack.c.l.b16 %v850
        %v889 = vunpack.c.h.b16 %v850
        %v890 = vunpack.c.l.b16 %v851
        %v891 = vunpack.c.h.b16 %v851
        %v892 = vunpack.c.l.b16 %v852
        %v893 = vunpack.c.h.b16 %v852
        %v894 = vunpack.c.l.b16 %v853
        %v895 = vunpack.c.h.b16 %v853
        %v896 = vunpack.c.l.b16 %v854
        %v897 = vunpack.c.h.b16 %v854
        %v898 = vunpack.c.l.b16 %v855
        %v899 = vunpack.c.h.b16 %v855
        %v900 = vunpack.c.l.b16 %v856
        %v901 = vunpack.c.h.b16 %v856
        %v902 = vunpack.c.l.b16 %v857
        %v903 = vunpack.c.h.b16 %v857
        %v904 = vunpack.c.l.b16 %v858
        %v905 = vunpack.c.h.b16 %v858
        %v906 = vunpack.c.l.b16 %v859
        %v907 = vunpack.c.h.b16 %v859
        %v908 = vpack.c.b16 %v876, %v876
        %v909 = vpack.c.b16 %v877, %v877
        %v910 = vpack.c.b16 %v878, %v878
        %v911 = vpack.c.b16 %v879, %v879
        %v912 = vpack.c.b16 %v880, %v880
        %v913 = vpack.c.b16 %v881, %v881
        %v914 = vpack.c.b16 %v882, %v882
        %v915 = vpack.c.b16 %v883, %v883
        %v916 = vpack.c.b16 %v884, %v884
        %v917 = vpack.c.b16 %v885, %v885
        %v918 = vpack.c.b16 %v886, %v886
        %v919 = vpack.c.b16 %v887, %v887
        %v920 = vpack.c.b16 %v888, %v888
        %v921 = vpack.c.b16 %v889, %v889
        %v922 = vpack.c.b16 %v890, %v890
        %v923 = vpack.c.b16 %v891, %v891
        %v924 = vpack.c.b16 %v892, %v892
        %v925 = vpack.c.b16 %v893, %v893
        %v926 = vpack.c.b16 %v894, %v894
        %v927 = vpack.c.b16 %v895, %v895
        %v928 = vpack.c.b16 %v896, %v896
        %v929 = vpack.c.b16 %v897, %v897
        %v930 = vpack.c.b16 %v898, %v898
        %v931 = vpack.c.b16 %v899, %v899
        %v932 = vpack.c.b16 %v900, %v900
        %v933 = vpack.c.b16 %v901, %v901
        %v934 = vpack.c.b16 %v902, %v902
        %v935 = vpack.c.b16 %v903, %v903
        %v936 = vpack.c.b16 %v904, %v904
        %v937 = vpack.c.b16 %v905, %v905
        %v938 = vpack.c.b16 %v906, %v906
        %v939 = vpack.c.b16 %v907, %v907
        %vm972 = vcmask 125952
        %973 = vst.msk [vmem:[%s257] sm:$0xf] %vm972, %v908
        %974 = vst.msk [vmem:[%s257 + $0x4] sm:$0xf] %vm972, %v909
        %975 = vst.msk [vmem:[%s257 + $0x8] sm:$0xf] %vm972, %v910
        %976 = vst.msk [vmem:[%s257 + $0xc] sm:$0xf] %vm972, %v911
        %977 = vst.msk [vmem:[%s257 + $0x10] sm:$0xf] %vm972, %v912
        %978 = vst.msk [vmem:[%s257 + $0x14] sm:$0xf] %vm972, %v913
        %979 = vst.msk [vmem:[%s257 + $0x18] sm:$0xf] %vm972, %v914
        %980 = vst.msk [vmem:[%s257 + $0x1c] sm:$0xf] %vm972, %v915
        %981 = vst.msk [vmem:[%s257 + $0x20] sm:$0xf] %vm972, %v916
        %982 = vst.msk [vmem:[%s257 + $0x24] sm:$0xf] %vm972, %v917
        %983 = vst.msk [vmem:[%s257 + $0x28] sm:$0xf] %vm972, %v918
        %984 = vst.msk [vmem:[%s257 + $0x2c] sm:$0xf] %vm972, %v919
        %985 = vst.msk [vmem:[%s257 + $0x30] sm:$0xf] %vm972, %v920
        %986 = vst.msk [vmem:[%s257 + $0x34] sm:$0xf] %vm972, %v921
        %987 = vst.msk [vmem:[%s257 + $0x38] sm:$0xf] %vm972, %v922
        %988 = vst.msk [vmem:[%s257 + $0x3c] sm:$0xf] %vm972, %v923
        %989 = vst.msk [vmem:[%s257 + $0x40] sm:$0xf] %vm972, %v924
        %990 = vst.msk [vmem:[%s257 + $0x44] sm:$0xf] %vm972, %v925
        %991 = vst.msk [vmem:[%s257 + $0x48] sm:$0xf] %vm972, %v926
        %992 = vst.msk [vmem:[%s257 + $0x4c] sm:$0xf] %vm972, %v927
        %993 = vst.msk [vmem:[%s257 + $0x50] sm:$0xf] %vm972, %v928
        %994 = vst.msk [vmem:[%s257 + $0x54] sm:$0xf] %vm972, %v929
        %995 = vst.msk [vmem:[%s257 + $0x58] sm:$0xf] %vm972, %v930
        %996 = vst.msk [vmem:[%s257 + $0x5c] sm:$0xf] %vm972, %v931
        %997 = vst.msk [vmem:[%s257 + $0x60] sm:$0xf] %vm972, %v932
        %998 = vst.msk [vmem:[%s257 + $0x64] sm:$0xf] %vm972, %v933
        %999 = vst.msk [vmem:[%s257 + $0x68] sm:$0xf] %vm972, %v934
        %1000 = vst.msk [vmem:[%s257 + $0x6c] sm:$0xf] %vm972, %v935
        %1001 = vst.msk [vmem:[%s257 + $0x70] sm:$0xf] %vm972, %v936
        %1002 = vst.msk [vmem:[%s257 + $0x74] sm:$0xf] %vm972, %v937
        %1003 = vst.msk [vmem:[%s257 + $0x78] sm:$0xf] %vm972, %v938
        %1004 = vst.msk [vmem:[%s257 + $0x7c] sm:$0xf] %vm972, %v939
      $region40: #{tpu_custom_call.1} parent=31 // pred_fallthru
        _
      %s1005 = smul.u32 32, %s19
      %p1006 = scmp.lt.s32.totalorder %s1005, 63
      %s1007 = scalar_select %p1006, %s1005, 63
      %p1008 = scmp.lt.s32.totalorder %s20, 0
      %s1009 = scalar_select %p1008, %s20, 0
      %s1010 = sadd.s32 %s1009, %s1007
      %s1011 = smul.addr %s1010, 4
      %s1012 = scalar_lea.vmem %s3, %s1011
      // Predicated region
      $region41: #{tpu_custom_call.1} parent=31 // pred_check
        %p1013 = pneg %p135
      $region42: #{tpu_custom_call.1} parent=31 // pred_check_branch
        %1015 = sbr.rel (%p1013) target = $region44
      $region43: #{tpu_custom_call.1} parent=31 // pred_region
        %s1016 = smul.u32 32, %s19
      $region44: #{tpu_custom_call.1} parent=31 // pred_fallthru
        _
    $region32: #{tpu_custom_call.1} parent=5 // pred_fallthru
      _
    %p1017 = scmp.le.s32.totalorder 2, %s9
    // Predicated region
    $region45: #{tpu_custom_call.1} parent=5 // pred_check
      %p1018 = pneg %p1017
    $region46: #{tpu_custom_call.1} parent=5 // pred_check_branch
      %1020 = sbr.rel (%p1018) target = $region48
    $region47: #{tpu_custom_call.1} parent=5 // pred_region
      %s1021 = ssub.s32 %s9, 2
      // Predicated region
      $region49: #{tpu_custom_call.1} parent=47 // pred_check
        %p1022 = pneg %p141
      $region50: #{tpu_custom_call.1} parent=47 // pred_check_branch
        %1024 = sbr.rel (%p1022) target = $region52
      $region51: #{tpu_custom_call.1} parent=47 // pred_region
        %s1025 = smul.u32 32, %s22
        %p1026 = scmp.lt.s32.totalorder %s1025, 63
        %s1027 = scalar_select %p1026, %s1025, 63
        %p1028 = scmp.lt.s32.totalorder %s23, 0
        %s1029 = scalar_select %p1028, %s23, 0
        %s1030 = sadd.s32 %s1029, %s1027
        %s1031 = smul.addr %s1030, 4
        %s1032 = scalar_lea.vmem %s3, %s1031
      $region52: #{tpu_custom_call.1} parent=47 // pred_fallthru
        _
    $region48: #{tpu_custom_call.1} parent=5 // pred_fallthru
      _
  $region6: #{tpu_custom_call.1} parent=0 // loop_footer
    %s13 = sadd.s32 1, %s9
  $region7: #{tpu_custom_call.1} parent=0 // loop_footer_branch
    %8 = sbr.rel target = $region3
  $region8: #{tpu_custom_call.1} parent=0 // loop_exit
    _

</llo_original>
